<compile_context>
chip_gen: v7x
topology: tpu7x:2x2x1
jax: 0.10.0
libtpu: 0.0.40
codegen_flags: <defaults>
</compile_context>

<pallas_src>
import jax
import jax.numpy as jnp
from jax.experimental import pallas as pl
from jax.experimental.pallas import tpu as pltpu

# ---------------- configuration (small, consistent with the module) ----------
B = 2          # batch
S = 8          # seq_len
D = 32         # embed_dim
F = 128        # ffn_dim (= 4 * embed_dim, same ratio as Kosmos2 text config)
EPS = 1e-5     # layer_norm_eps
N = B * S      # rows processed per (single) kernel invocation

_INV_SQRT2 = 0.7071067811865476


def _erf(x):
    # Abramowitz & Stegun 7.1.26 polynomial approximation, |error| <= 1.5e-7.
    a1, a2, a3, a4, a5 = (0.254829592, -0.284496736, 1.421413741,
                          -1.453152027, 1.061405429)
    p = 0.3275911
    ax = jnp.abs(x)
    t = 1.0 / (1.0 + p * ax)
    poly = ((((a5 * t + a4) * t + a3) * t + a2) * t + a1) * t
    y = 1.0 - poly * jnp.exp(-ax * ax)
    return jnp.where(x >= 0.0, y, -y)


def _gelu_exact(x):
    # Matches HF ACT2FN["gelu"] == torch.nn.functional.gelu (erf form).
    return 0.5 * x * (1.0 + _erf(x * _INV_SQRT2))


def ffn_kernel(x_ref, w1_ref, w2_ref, aux_ref, out_ref):
    # Packed small params (f32, lane-dense (4, F)).
    b1 = aux_ref[0:1, :]            # (1, F) fc1 bias
    g = aux_ref[1:2, :]             # (1, F) LN gamma
    bln = aux_ref[2:3, :]           # (1, F) LN beta
    b2 = aux_ref[3:4, 0:D]          # (1, D) fc2 bias (zero-padded to F lanes)

    # fc1 (bf16 MXU operands, f32 accumulation) + exact GELU.
    x = x_ref[...].astype(jnp.bfloat16)                       # (N, D)
    h = jnp.dot(x, w1_ref[...], preferred_element_type=jnp.float32) + b1
    h = _gelu_exact(h)
    # activation_dropout: no-op in inference

    # ffn_layernorm over ffn_dim: two independent reductions, single
    # (h - mu) * rsqrt(var + eps) normalization pass.
    inv_f = jnp.float32(1.0 / F)
    s1 = jnp.sum(h, axis=-1, keepdims=True)
    s2 = jnp.sum(h * h, axis=-1, keepdims=True)
    mu = s1 * inv_f
    var = s2 * inv_f - mu * mu
    hn = (h - mu) * jax.lax.rsqrt(var + EPS) * g + bln

    # fc2 (bf16 MXU operands, f32 accumulation).
    y = jnp.dot(hn.astype(jnp.bfloat16), w2_ref[...],
                preferred_element_type=jnp.float32) + b2
    # dropout: no-op in inference
    out_ref[...] = y.astype(out_ref.dtype)


def kosmos2_text_ffn(hidden_states, params):
    """hidden_states: (B, S, D) float32; params: dict from init_params."""
    x2d = hidden_states.reshape(N, D)      # free row-major reshape
    vmem = pl.BlockSpec(memory_space=pltpu.MemorySpace.VMEM)
    f = pl.pallas_call(
        ffn_kernel,
        in_specs=[vmem, vmem, vmem, vmem],
        out_specs=vmem,
        out_shape=jax.ShapeDtypeStruct((N, D), jnp.float32),
    )
    out = f(x2d, params["w1"], params["w2"], params["aux"])
    return out.reshape(B, S, D)


# ---------------- pure-JAX reference (mirrors the PyTorch forward) -----------
def reference(x, p):
    w1 = p["w1"].astype(jnp.float32)
    w2 = p["w2"].astype(jnp.float32)
    b1 = p["aux"][0]
    g, bln = p["aux"][1], p["aux"][2]
    b2 = p["aux"][3, :D]

    h = x @ w1 + b1
    h = jax.nn.gelu(h, approximate=False)          # exact erf GELU
    mu = jnp.mean(h, axis=-1, keepdims=True)
    var = jnp.mean((h - mu) ** 2, axis=-1, keepdims=True)
    h = (h - mu) / jnp.sqrt(var + EPS) * g + bln
    h = h @ w2 + b2
    return h


def init_params(key):
    ks = jax.random.split(key, 6)
    n = lambda k, s: (0.02 * jax.random.normal(k, s)).astype(jnp.float32)
    # nn.Linear computes y = x @ W^T + b with W of shape (out, in);
    # here we store already-transposed (in, out) matrices, in bf16 for the MXU.
    b1 = n(ks[1], (F,))
    ln_g = (1.0 + n(ks[4], (F,))).astype(jnp.float32)
    ln_b = n(ks[5], (F,))
    b2 = n(ks[3], (D,))
    b2_pad = jnp.zeros((F,), jnp.float32).at[:D].set(b2)
    aux = jnp.stack([b1, ln_g, ln_b, b2_pad], axis=0)   # (4, F) packed params
    return {
        "w1": n(ks[0], (D, F)).astype(jnp.bfloat16),
        "w2": n(ks[2], (F, D)).astype(jnp.bfloat16),
        "aux": aux,
    }


if __name__ == "__main__":
    key = jax.random.PRNGKey(0)
    k_x, k_p = jax.random.split(key)

    x = jax.random.normal(k_x, (B, S, D), dtype=jnp.float32)
    params = init_params(k_p)

    out = kosmos2_text_ffn(x, params)
    out = jax.block_until_ready(out)

    ref = reference(x, params)
    assert out.shape == (B, S, D)
    err = jnp.max(jnp.abs(out - ref))
    # bf16 MXU operands (f32 accumulation): activation rounding limits accuracy
    # to ~1e-3 absolute here, so the check uses 1e-2 tolerances.
    assert jnp.allclose(out, ref, rtol=1e-2, atol=1e-2), f"max abs err {err}"

    print("KERNEL_OK")
</pallas_src>

<mosaic_0001>
module attributes {stable_mosaic.version = 11 : i64} {
  func.func @ffn_kernel(%arg0: memref<16x32xf32, #tpu.memory_space<vmem>>, %arg1: memref<32x128xbf16, #tpu.memory_space<vmem>>, %arg2: memref<128x32xbf16, #tpu.memory_space<vmem>>, %arg3: memref<4x128xf32, #tpu.memory_space<vmem>>, %arg4: memref<16x32xf32, #tpu.memory_space<vmem>>) attributes {dimension_semantics = [], scalar_prefetch = 0 : i64, scratch_operands = 0 : i64, tpu.core_type = #tpu.core_type<tc>} {
    %c0 = arith.constant 0 : index
    %c0_0 = arith.constant 0 : index
    %0 = vector.load %arg3[%c0, %c0_0] : memref<4x128xf32, #tpu.memory_space<vmem>>, vector<1x128xf32>
    %c1 = arith.constant 1 : index
    %c0_1 = arith.constant 0 : index
    %1 = vector.load %arg3[%c1, %c0_1] : memref<4x128xf32, #tpu.memory_space<vmem>>, vector<1x128xf32>
    %c2 = arith.constant 2 : index
    %c0_2 = arith.constant 0 : index
    %2 = vector.load %arg3[%c2, %c0_2] : memref<4x128xf32, #tpu.memory_space<vmem>>, vector<1x128xf32>
    %c3 = arith.constant 3 : index
    %c0_3 = arith.constant 0 : index
    %3 = vector.load %arg3[%c3, %c0_3] : memref<4x128xf32, #tpu.memory_space<vmem>>, vector<1x32xf32>
    %c0_4 = arith.constant 0 : index
    %c0_5 = arith.constant 0 : index
    %4 = vector.load %arg0[%c0_4, %c0_5] : memref<16x32xf32, #tpu.memory_space<vmem>>, vector<16x32xf32>
    %5 = arith.truncf %4 : vector<16x32xf32> to vector<16x32xbf16>
    %c0_6 = arith.constant 0 : index
    %c0_7 = arith.constant 0 : index
    %6 = vector.load %arg1[%c0_6, %c0_7] : memref<32x128xbf16, #tpu.memory_space<vmem>>, vector<32x128xbf16>
    %cst = arith.constant dense<0.000000e+00> : vector<16x128xf32>
    %7 = tpu.matmul %5, %6, %cst {dimension_numbers = #tpu.dot_dimension_numbers<[1], [0], [0], [1], [0, 0, 1, 1], [], []>} : vector<16x32xbf16>, vector<32x128xbf16>, vector<16x128xf32> -> vector<16x128xf32>
    %8 = vector.broadcast %0 : vector<1x128xf32> to vector<16x128xf32>
    %9 = arith.addf %7, %8 : vector<16x128xf32>
    %cst_8 = arith.constant 5.000000e-01 : f32
    %10 = vector.broadcast %cst_8 : f32 to vector<16x128xf32>
    %11 = arith.mulf %10, %9 : vector<16x128xf32>
    %cst_9 = arith.constant 0.707106769 : f32
    %12 = vector.broadcast %cst_9 : f32 to vector<16x128xf32>
    %13 = arith.mulf %9, %12 : vector<16x128xf32>
    %14 = math.absf %13 : vector<16x128xf32>
    %cst_10 = arith.constant 0.327591091 : f32
    %15 = vector.broadcast %cst_10 : f32 to vector<16x128xf32>
    %16 = arith.mulf %15, %14 : vector<16x128xf32>
    %cst_11 = arith.constant 1.000000e+00 : f32
    %17 = vector.broadcast %cst_11 : f32 to vector<16x128xf32>
    %18 = arith.addf %17, %16 : vector<16x128xf32>
    %cst_12 = arith.constant 1.000000e+00 : f32
    %19 = vector.broadcast %cst_12 : f32 to vector<16x128xf32>
    %20 = arith.divf %19, %18 : vector<16x128xf32>
    %cst_13 = arith.constant 1.06140542 : f32
    %21 = vector.broadcast %cst_13 : f32 to vector<16x128xf32>
    %22 = arith.mulf %21, %20 : vector<16x128xf32>
    %cst_14 = arith.constant -1.45315206 : f32
    %23 = vector.broadcast %cst_14 : f32 to vector<16x128xf32>
    %24 = arith.addf %22, %23 : vector<16x128xf32>
    %25 = arith.mulf %24, %20 : vector<16x128xf32>
    %cst_15 = arith.constant 1.42141378 : f32
    %26 = vector.broadcast %cst_15 : f32 to vector<16x128xf32>
    %27 = arith.addf %25, %26 : vector<16x128xf32>
    %28 = arith.mulf %27, %20 : vector<16x128xf32>
    %cst_16 = arith.constant -0.284496725 : f32
    %29 = vector.broadcast %cst_16 : f32 to vector<16x128xf32>
    %30 = arith.addf %28, %29 : vector<16x128xf32>
    %31 = arith.mulf %30, %20 : vector<16x128xf32>
    %cst_17 = arith.constant 0.254829586 : f32
    %32 = vector.broadcast %cst_17 : f32 to vector<16x128xf32>
    %33 = arith.addf %31, %32 : vector<16x128xf32>
    %34 = arith.mulf %33, %20 : vector<16x128xf32>
    %cst_18 = arith.constant 0.000000e+00 : f32
    %35 = vector.broadcast %cst_18 : f32 to vector<16x128xf32>
    %36 = arith.subf %35, %14 : vector<16x128xf32>
    %37 = arith.mulf %36, %14 : vector<16x128xf32>
    %38 = math.exp %37 : vector<16x128xf32>
    %39 = arith.mulf %34, %38 : vector<16x128xf32>
    %cst_19 = arith.constant 1.000000e+00 : f32
    %40 = vector.broadcast %cst_19 : f32 to vector<16x128xf32>
    %41 = arith.subf %40, %39 : vector<16x128xf32>
    %cst_20 = arith.constant 0.000000e+00 : f32
    %42 = vector.broadcast %cst_20 : f32 to vector<16x128xf32>
    %43 = arith.cmpf oge, %13, %42 : vector<16x128xf32>
    %cst_21 = arith.constant 0.000000e+00 : f32
    %44 = vector.broadcast %cst_21 : f32 to vector<16x128xf32>
    %45 = arith.subf %44, %41 : vector<16x128xf32>
    %46 = arith.select %43, %41, %45 : vector<16x128xi1>, vector<16x128xf32>
    %cst_22 = arith.constant 1.000000e+00 : f32
    %47 = vector.broadcast %cst_22 : f32 to vector<16x128xf32>
    %48 = arith.addf %47, %46 : vector<16x128xf32>
    %49 = arith.mulf %11, %48 : vector<16x128xf32>
    %cst_23 = arith.constant dense<0.000000e+00> : vector<16xf32>
    %50 = vector.multi_reduction <add>, %49, %cst_23 [1] : vector<16x128xf32> to vector<16xf32>
    %51 = vector.shape_cast %50 : vector<16xf32> to vector<16x1xf32>
    %52 = arith.mulf %49, %49 : vector<16x128xf32>
    %cst_24 = arith.constant dense<0.000000e+00> : vector<16xf32>
    %53 = vector.multi_reduction <add>, %52, %cst_24 [1] : vector<16x128xf32> to vector<16xf32>
    %54 = vector.shape_cast %53 : vector<16xf32> to vector<16x1xf32>
    %cst_25 = arith.constant 7.812500e-03 : f32
    %55 = vector.broadcast %cst_25 : f32 to vector<16x1xf32>
    %56 = arith.mulf %51, %55 : vector<16x1xf32>
    %cst_26 = arith.constant 7.812500e-03 : f32
    %57 = vector.broadcast %cst_26 : f32 to vector<16x1xf32>
    %58 = arith.mulf %54, %57 : vector<16x1xf32>
    %59 = arith.mulf %56, %56 : vector<16x1xf32>
    %60 = arith.subf %58, %59 : vector<16x1xf32>
    %61 = vector.broadcast %56 : vector<16x1xf32> to vector<16x128xf32>
    %62 = arith.subf %49, %61 : vector<16x128xf32>
    %cst_27 = arith.constant 9.99999974E-6 : f32
    %63 = vector.broadcast %cst_27 : f32 to vector<16x1xf32>
    %64 = arith.addf %60, %63 : vector<16x1xf32>
    %65 = math.rsqrt %64 : vector<16x1xf32>
    %66 = vector.broadcast %65 : vector<16x1xf32> to vector<16x128xf32>
    %67 = arith.mulf %62, %66 : vector<16x128xf32>
    %68 = vector.broadcast %1 : vector<1x128xf32> to vector<16x128xf32>
    %69 = arith.mulf %67, %68 : vector<16x128xf32>
    %70 = vector.broadcast %2 : vector<1x128xf32> to vector<16x128xf32>
    %71 = arith.addf %69, %70 : vector<16x128xf32>
    %72 = arith.truncf %71 : vector<16x128xf32> to vector<16x128xbf16>
    %c0_28 = arith.constant 0 : index
    %c0_29 = arith.constant 0 : index
    %73 = vector.load %arg2[%c0_28, %c0_29] : memref<128x32xbf16, #tpu.memory_space<vmem>>, vector<128x32xbf16>
    %cst_30 = arith.constant dense<0.000000e+00> : vector<16x32xf32>
    %74 = tpu.matmul %72, %73, %cst_30 {dimension_numbers = #tpu.dot_dimension_numbers<[1], [0], [0], [1], [0, 0, 1, 1], [], []>} : vector<16x128xbf16>, vector<128x32xbf16>, vector<16x32xf32> -> vector<16x32xf32>
    %75 = vector.broadcast %3 : vector<1x32xf32> to vector<16x32xf32>
    %76 = arith.addf %74, %75 : vector<16x32xf32>
    %c0_31 = arith.constant 0 : index
    %c0_32 = arith.constant 0 : index
    %77 = vector.load %arg4[%c0_31, %c0_32] : memref<16x32xf32, #tpu.memory_space<vmem>>, vector<16x32xf32>
    tpu.vector_store %arg4[%c0_31, %c0_32], %76 {strides = array<i32>} : memref<16x32xf32, #tpu.memory_space<vmem>>, vector<16x32xf32>,
    return
  }
}

</mosaic_0001>

<llo_original>
// kernel: tpu_custom_call.1
$region0: #{tpu_custom_call.1}
  #allocation0 [shape = 'u32[]', space=smem, size = 0x4, offset = 0x4, fixed_abs, tag = 'smem constant byte address 0x4 - core index']
  #allocation1 [shape = 'u32[144,128]{1,0:T(1,128)}', space=vmem, size = 0x12000, scoped, tag = 'internal scratch']
  %s0 = inlined_call_operand.vmem [shape: f32[16,32], index: 0, kind: input, shape index: {}]
  %s1 = inlined_call_operand.vmem [shape: bf16[32,128], index: 1, kind: input, shape index: {}]
  %s2 = inlined_call_operand.vmem [shape: bf16[128,32], index: 2, kind: input, shape index: {}]
  %s3 = inlined_call_operand.vmem [shape: f32[4,128], index: 3, kind: input, shape index: {}]
  %s4 = inlined_call_operand.hbm [shape: f32[16,32], index: 4, kind: output, shape index: {}]
  %s5 = sld [smem:[#allocation0]]
  $region26: #{tpu_custom_call.1} parent=0
    _
  %s7 = ssub.s32 1, %s5
  %s8 = scalar_select 0, %s7, %s5
  $region1: #{tpu_custom_call.1} parent=0
    #allocation2 [shape = 'u8[8192]{0}', space=vmem, size = 0x2000, scoped, tag = 'output window, operand 0, single buffered']
    #allocation3 [shape = 's32[1]{0}', space=sflag, size = 0x4, scoped, tag = 'scoped memory for tpu_custom_call.1']
    %9 = vsyncpa [#allocation3], 0
    // Predicated region
    $region2: #{tpu_custom_call.1} parent=1 // pred_check
      _
    $region3: #{tpu_custom_call.1} parent=1 // pred_check_branch
      %11 = sbr.rel (0) target = $region5
    $region4: #{tpu_custom_call.1} parent=1 // pred_region
      _
    $region5: #{tpu_custom_call.1} parent=1 // pred_fallthru
      _
    // Predicated region
    $region6: #{tpu_custom_call.1} parent=1 // pred_check
      _
    $region7: #{tpu_custom_call.1} parent=1 // pred_check_branch
      %13 = sbr.rel (0) target = $region9
    $region8: #{tpu_custom_call.1} parent=1 // pred_region
      _
    $region9: #{tpu_custom_call.1} parent=1 // pred_fallthru
      _
    // Predicated region
    $region10: #{tpu_custom_call.1} parent=1 // pred_check
      _
    $region11: #{tpu_custom_call.1} parent=1 // pred_check_branch
      %15 = sbr.rel (0) target = $region13
    $region12: #{tpu_custom_call.1} parent=1 // pred_region
      _
    $region13: #{tpu_custom_call.1} parent=1 // pred_fallthru
      _
    // Predicated region
    $region14: #{tpu_custom_call.1} parent=1 // pred_check
      _
    $region15: #{tpu_custom_call.1} parent=1 // pred_check_branch
      %17 = sbr.rel (0) target = $region17
    $region16: #{tpu_custom_call.1} parent=1 // pred_region
      _
    $region17: #{tpu_custom_call.1} parent=1 // pred_fallthru
      _
    %v19 = vld [vmem:[%s3] sm:$0x1]
    %v20 = vld [vmem:[%s3 + $0x1] sm:$0x1]
    %v21 = vld [vmem:[%s3 + $0x2] sm:$0x1]
    %v22 = vld [vmem:[%s3 + $0x3] sm:$0x1]
    %v23 = vld [vmem:[%s0] sm:$0xff]
    %v24 = vld [vmem:[%s0 + $0x8] sm:$0xff]
    %v25 = vpack.c.bf16 %v24, %v23
    %v26 = vld [vmem:[%s1] sm:$0xf]
    %v27 = vld [vmem:[%s1 + $0x4] sm:$0xf]
    %v28 = vld [vmem:[%s1 + $0x8] sm:$0xf]
    %v29 = vld [vmem:[%s1 + $0xc] sm:$0xf]
    %v30 = vlaneseq
    %v31 = vshrl.u32 %v30, 7
    %v32 = vsub.s32 0, %v31
    %v33 = vrot.slane %v19, %v32
    %v38 = vunpack.c.l.b16 %v26
    %v39 = vunpack.c.l.b16 %v27
    %v40 = vunpack.c.l.b16 %v28
    %v41 = vunpack.c.l.b16 %v29
    %v42 = vpack.c.b16 %v39, %v38
    %v43 = vpack.c.b16 %v41, %v40
    %vm46 = vcmask 261120
    %v48 = vsel %vm46, %v25, 0
    %50 = vmatprep.subr.bf16.mxu0 0
    %51 = vmatpush1.bf16.msra.mxu0 %v42
    %52 = vmatprep.subr.bf16.mxu0 0
    %53 = vmatpush1.bf16.msra.mxu0 %v43
    %54 = vmatprep.subr.bf16.mxu0 0
    %55 = vmatpush1.bf16.msra.mxu0 0
    %56 = vmatprep.subr.bf16.mxu0 0
    %57 = vmatpush1.bf16.msra.mxu0 0
    %58 = vmatprep.subr.bf16.mxu0 0
    %59 = vmatpush1.bf16.msra.mxu0 0
    %60 = vmatprep.subr.bf16.mxu0 0
    %61 = vmatpush1.bf16.msra.mxu0 0
    %62 = vmatprep.subr.bf16.mxu0 0
    %63 = vmatpush1.bf16.msra.mxu0 0
    %64 = vmatprep.subr.bf16.mxu0 0
    %65 = vmatpush1.bf16.msra.mxu0 0
    %66 = vmatprep.subr.bf16.mxu0 0
    %67 = vmatpush1.bf16.msra.mxu0 0
    %68 = vmatprep.subr.bf16.mxu0 0
    %69 = vmatpush1.bf16.msra.mxu0 0
    %70 = vmatprep.subr.bf16.mxu0 0
    %71 = vmatpush1.bf16.msra.mxu0 0
    %72 = vmatprep.subr.bf16.mxu0 0
    %73 = vmatpush1.bf16.msra.mxu0 0
    %74 = vmatprep.subr.bf16.mxu0 0
    %75 = vmatpush1.bf16.msra.mxu0 0
    %76 = vmatprep.subr.bf16.mxu0 0
    %77 = vmatpush1.bf16.msra.mxu0 0
    %78 = vmatprep.subr.bf16.mxu0 0
    %79 = vmatpush1.bf16.msra.mxu0 0
    %80 = vmatprep.subr.bf16.mxu0 0
    %81 = vmatpush1.bf16.msra.mxu0 0
    %82 = vmatprep.mubr.bf16.mxu0 0
    %83 = vmatmul.mubr.bf16.gmra.mrb[0].mxu0 %v48
    %v84 = vpop.f32.mrb[0].mxu0
    %v85 = vadd.f32 %v33, %v84
    %v86 = vpop.f32.mrb[0].mxu0
    %v87 = vpop.f32.mrb[0].mxu0
    %v88 = vadd.f32 %v33, %v87
    %v89 = vpop.f32.mrb[0].mxu0
    %90 = vdwg.mxu0
    %v91 = vmul.f32 %v85, 0.5
    %v92 = vmul.f32 %v88, 0.5
    %v93 = vmul.f32 %v85, 0.70710677
    %v94 = vmul.f32 %v88, 0.70710677
    %v95 = vand.u32 2147483647, %v93
    %v96 = vand.u32 2147483647, %v94
    %v97 = vmul.f32 %v95, 0.3275911
    %v98 = vmul.f32 %v96, 0.3275911
    %v99 = vadd.f32 %v97, 1.0
    %v100 = vadd.f32 %v98, 1.0
    %v101 = vrcp.pop %v99
    %v102 = vmul.f32 1.0, %v101
    %v103 = vrcp.pop %v100
    %v104 = vmul.f32 1.0, %v103
    %v105 = vmul.f32 %v102, 1.0614054
    %v106 = vmul.f32 %v104, 1.0614054
    %v107 = vadd.f32 %v105, -1.4531521
    %v108 = vadd.f32 %v106, -1.4531521
    %v109 = vmul.f32 %v107, %v102
    %v110 = vmul.f32 %v108, %v104
    %v111 = vadd.f32 %v109, 1.4214138
    %v112 = vadd.f32 %v110, 1.4214138
    %v113 = vmul.f32 %v111, %v102
    %v114 = vmul.f32 %v112, %v104
    %v115 = vadd.f32 %v113, -0.28449672
    %v116 = vadd.f32 %v114, -0.28449672
    %v117 = vmul.f32 %v115, %v102
    %v118 = vmul.f32 %v116, %v104
    %v119 = vadd.f32 %v117, 0.2548296
    %v120 = vadd.f32 %v118, 0.2548296
    %v121 = vmul.f32 %v119, %v102
    %v122 = vmul.f32 %v120, %v104
    %v123 = vsub.f32 0.0, %v95
    %v124 = vsub.f32 0.0, %v96
    %v125 = vmul.f32 %v123, %v95
    %v126 = vmul.f32 %v124, %v96
    %v127 = vmul.f32 %v125, 1.442695
    %v128 = vpow.pop %v127
    %v129 = vmul.f32 %v126, 1.442695
    %v130 = vpow.pop %v129
    %v131 = vmul.f32 %v121, %v128
    %v132 = vmul.f32 %v122, %v130
    %v133 = vsub.f32 1.0, %v131
    %v134 = vsub.f32 1.0, %v132
    %vm135 = vcmp.ge.f32.partialorder %v93, 0.0
    %vm136 = vcmp.ge.f32.partialorder %v94, 0.0
    %v137 = vsub.f32 0.0, %v133
    %v138 = vsub.f32 0.0, %v134
    %v139 = vsel %vm135, %v133, %v137
    %v140 = vsel %vm136, %v134, %v138
    %v141 = vadd.f32 %v139, 1.0
    %v142 = vadd.f32 %v140, 1.0
    %v143 = vmul.f32 %v91, %v141
    %v144 = vmul.f32 %v92, %v142
    %145 = vadd.xlane.f32.xlu0 %v143
    %v146 = vpop.xlane.xlu0 %145
    %147 = vadd.xlane.f32.xlu0 %v144
    %v148 = vpop.xlane.xlu0 %147
    %v149 = vmul.f32 %v143, %v143
    %v150 = vmul.f32 %v144, %v144
    %151 = vadd.xlane.f32.xlu0 %v149
    %v152 = vpop.xlane.xlu0 %151
    %153 = vadd.xlane.f32.xlu0 %v150
    %v154 = vpop.xlane.xlu0 %153
    %v155 = vmul.f32 %v146, 0.0078125
    %v156 = vmul.f32 %v148, 0.0078125
    %v157 = vmul.f32 %v152, 0.0078125
    %v158 = vmul.f32 %v154, 0.0078125
    %v159 = vmul.f32 %v155, %v155
    %v160 = vmul.f32 %v156, %v156
    %v161 = vsub.f32 %v157, %v159
    %v162 = vsub.f32 %v158, %v160
    %v163 = vsub.f32 %v143, %v155
    %v164 = vsub.f32 %v144, %v156
    %v165 = vadd.f32 %v161, 1e-05
    %v166 = vadd.f32 %v162, 1e-05
    %v167 = vrsqrt.pop %v165
    %v168 = vrsqrt.pop %v166
    %v169 = vmul.f32 %v163, %v167
    %v170 = vmul.f32 %v164, %v168
    %v171 = vlaneseq
    %v172 = vshrl.u32 %v171, 7
    %v173 = vsub.s32 0, %v172
    %v174 = vrot.slane %v20, %v173
    %v175 = vmul.f32 %v169, %v174
    %v176 = vmul.f32 %v170, %v174
    %v177 = vlaneseq
    %v178 = vshrl.u32 %v177, 7
    %v179 = vsub.s32 0, %v178
    %v180 = vrot.slane %v21, %v179
    %v181 = vadd.f32 %v175, %v180
    %v182 = vadd.f32 %v176, %v180
    %v183 = vpack.c.bf16 %v182, %v181
    %v184 = vld [vmem:[%s2] sm:$0xf]
    %v185 = vld [vmem:[%s2 + $0x4] sm:$0xf]
    %v186 = vld [vmem:[%s2 + $0x8] sm:$0xf]
    %v187 = vld [vmem:[%s2 + $0xc] sm:$0xf]
    %v188 = vld [vmem:[%s2 + $0x10] sm:$0xf]
    %v189 = vld [vmem:[%s2 + $0x14] sm:$0xf]
    %v190 = vld [vmem:[%s2 + $0x18] sm:$0xf]
    %v191 = vld [vmem:[%s2 + $0x1c] sm:$0xf]
    %v192 = vld [vmem:[%s2 + $0x20] sm:$0xf]
    %v193 = vld [vmem:[%s2 + $0x24] sm:$0xf]
    %v194 = vld [vmem:[%s2 + $0x28] sm:$0xf]
    %v195 = vld [vmem:[%s2 + $0x2c] sm:$0xf]
    %v196 = vld [vmem:[%s2 + $0x30] sm:$0xf]
    %v197 = vld [vmem:[%s2 + $0x34] sm:$0xf]
    %v198 = vld [vmem:[%s2 + $0x38] sm:$0xf]
    %v199 = vld [vmem:[%s2 + $0x3c] sm:$0xf]
    %v200 = vlaneseq
    %v201 = vshrl.u32 %v200, 7
    %v202 = vsub.s32 0, %v201
    %v203 = vrot.slane %v22, %v202
    %v220 = vunpack.c.l.b16 %v184
    %v221 = vunpack.c.l.b16 %v185
    %v222 = vunpack.c.l.b16 %v186
    %v223 = vunpack.c.l.b16 %v187
    %v224 = vunpack.c.l.b16 %v188
    %v225 = vunpack.c.l.b16 %v189
    %v226 = vunpack.c.l.b16 %v190
    %v227 = vunpack.c.l.b16 %v191
    %v228 = vunpack.c.l.b16 %v192
    %v229 = vunpack.c.l.b16 %v193
    %v230 = vunpack.c.l.b16 %v194
    %v231 = vunpack.c.l.b16 %v195
    %v232 = vunpack.c.l.b16 %v196
    %v233 = vunpack.c.l.b16 %v197
    %v234 = vunpack.c.l.b16 %v198
    %v235 = vunpack.c.l.b16 %v199
    %v236 = vpack.c.b16 %v221, %v220
    %v237 = vpack.c.b16 %v223, %v222
    %v238 = vpack.c.b16 %v225, %v224
    %v239 = vpack.c.b16 %v227, %v226
    %v240 = vpack.c.b16 %v229, %v228
    %v241 = vpack.c.b16 %v231, %v230
    %v242 = vpack.c.b16 %v233, %v232
    %v243 = vpack.c.b16 %v235, %v234
    %252 = vmatprep.subr.bf16.mxu0 0
    %253 = vmatpush1.bf16.msra.mxu0 %v236
    %254 = vmatprep.subr.bf16.mxu0 0
    %255 = vmatpush1.bf16.msra.mxu0 %v237
    %256 = vmatprep.subr.bf16.mxu0 0
    %257 = vmatpush1.bf16.msra.mxu0 %v238
    %258 = vmatprep.subr.bf16.mxu0 0
    %259 = vmatpush1.bf16.msra.mxu0 %v239
    %260 = vmatprep.subr.bf16.mxu0 0
    %261 = vmatpush1.bf16.msra.mxu0 %v240
    %262 = vmatprep.subr.bf16.mxu0 0
    %263 = vmatpush1.bf16.msra.mxu0 %v241
    %264 = vmatprep.subr.bf16.mxu0 0
    %265 = vmatpush1.bf16.msra.mxu0 %v242
    %266 = vmatprep.subr.bf16.mxu0 0
    %267 = vmatpush1.bf16.msra.mxu0 %v243
    %268 = vmatprep.subr.bf16.mxu0 0
    %269 = vmatpush1.bf16.msra.mxu0 0
    %270 = vmatprep.subr.bf16.mxu0 0
    %271 = vmatpush1.bf16.msra.mxu0 0
    %272 = vmatprep.subr.bf16.mxu0 0
    %273 = vmatpush1.bf16.msra.mxu0 0
    %274 = vmatprep.subr.bf16.mxu0 0
    %275 = vmatpush1.bf16.msra.mxu0 0
    %276 = vmatprep.subr.bf16.mxu0 0
    %277 = vmatpush1.bf16.msra.mxu0 0
    %278 = vmatprep.subr.bf16.mxu0 0
    %279 = vmatpush1.bf16.msra.mxu0 0
    %280 = vmatprep.subr.bf16.mxu0 0
    %281 = vmatpush1.bf16.msra.mxu0 0
    %282 = vmatprep.subr.bf16.mxu0 0
    %283 = vmatpush1.bf16.msra.mxu0 0
    %284 = vmatprep.mubr.bf16.mxu0 0
    %285 = vmatmul.mubr.bf16.gmra.mrb[0].mxu0 %v183
    %v286 = vpop.f32.mrb[0].mxu0
    %v287 = vadd.f32 %v203, %v286
    %v288 = vpop.f32.mrb[0].mxu0
    %v289 = vpop.f32.mrb[0].mxu0
    %v290 = vadd.f32 %v203, %v289
    %v291 = vpop.f32.mrb[0].mxu0
    %292 = vdwg.mxu0
    %293 = vst.msk [vmem:[#allocation2] sm:$0xff] %vm46, %v287
    %294 = vst.msk [vmem:[#allocation2 + $0x8] sm:$0xff] %vm46, %v290
    // Predicated region
    $region18: #{tpu_custom_call.1} parent=1 // pred_check
      _
    $region19: #{tpu_custom_call.1} parent=1 // pred_check_branch
      %296 = sbr.rel (0) target = $region21
    $region20: #{tpu_custom_call.1} parent=1 // pred_region
      %s298 = ssub.s32 256, 256
      %299 = vsyncadd [#allocation3], %s298
      %s300 = sshll.u32 [#allocation2], 4
      %s301 = int_to_ptr.vmem [resolvable:$true] %s300
      %306 = dma.vmem_to_hbm [thread:$0]  %s301, 256, %s4, [#allocation3], 128, 128, 8
    $region21: #{tpu_custom_call.1} parent=1 // pred_fallthru
      _
    // Predicated region
    $region22: #{tpu_custom_call.1} parent=1 // pred_check
      _
    $region23: #{tpu_custom_call.1} parent=1 // pred_check_branch
      %308 = sbr.rel (0) target = $region25
    $region24: #{tpu_custom_call.1} parent=1 // pred_region
      %309 = dma.done [#allocation3], 256
    $region25: #{tpu_custom_call.1} parent=1 // pred_fallthru
      _
    %310 = vsyncpa [#allocation3], 1

</llo_original>
